<compile_context>
chip_gen: v7x
topology: tpu7x:2x2x1
jax: 0.10.0
libtpu: 0.0.40
codegen_flags: <defaults>
</compile_context>

<pallas_src>
import math
import functools

import jax
import jax.numpy as jnp
from jax.experimental import pallas as pl
from jax.experimental.pallas import tpu as pltpu


def make_positional_encoding_table(max_len, d_model, dtype=jnp.float32):
    """Deterministic sinusoidal table, identical math to the PyTorch __init__."""
    position = jnp.arange(max_len, dtype=jnp.float32)[:, None]                 # (max_len, 1)
    div_term = jnp.exp(
        jnp.arange(0, d_model, 2, dtype=jnp.float32) * (-math.log(10000.0) / d_model)
    )                                                                          # (d_model/2,)
    pe = jnp.zeros((max_len, d_model), dtype=jnp.float32)
    pe = pe.at[:, 0::2].set(jnp.sin(position * div_term))
    pe = pe.at[:, 1::2].set(jnp.cos(position * div_term))
    return pe.astype(dtype)


def _add_pe_kernel(x_ref, pe_ref, o_ref, *, batch):
    # x_ref/o_ref: (tS, B*D) lane-dense tiles; pe_ref: (tS, D).
    pe_tiled = jnp.tile(pe_ref[...], (1, batch))          # lane replicate (XLU slot)
    o_ref[...] = (x_ref[...] + pe_tiled).astype(o_ref.dtype)


def _add_pe_dropout_kernel(x_ref, pe_ref, bits_ref, o_ref, *, batch, threshold, scale):
    pe_tiled = jnp.tile(pe_ref[...], (1, batch))
    y = x_ref[...] + pe_tiled
    # Integer-threshold Bernoulli: P(keep) = 1 - p, no shift/convert/mul on VPU.
    keep = bits_ref[...] >= jnp.uint32(threshold)
    o_ref[...] = jnp.where(
        keep, y * jnp.asarray(scale, y.dtype), jnp.zeros_like(y)
    ).astype(o_ref.dtype)


def _choose_seq_tile(S, step_row_bytes, budget_bytes=8 << 20):
    """Largest multiple-of-8 divisor of S whose per-grid-step tiles fit the budget."""
    if S % 8 != 0:
        return S                      # full-extent block (always a legal block shape)
    best = 8
    for t in range(8, S + 1, 8):
        if S % t == 0 and t * step_row_bytes <= budget_bytes:
            best = t
    return best


def positional_encoding(x, pe, *, dropout_p=0.1, training=False, rng_key=None,
                        seq_tile=None, vmem_limit_bytes=48 * 1024 * 1024):
    """x: [S, B, D]; pe: [max_len, D] with max_len >= S. Returns [S, B, D]."""
    S, B, D = x.shape
    assert pe.shape[0] >= S and pe.shape[1] == D

    apply_dropout = bool(training) and float(dropout_p) > 0.0
    if apply_dropout and float(dropout_p) >= 1.0:
        return jnp.zeros_like(x)      # matches nn.Dropout(p=1.0) behavior

    # Lane-dense 2D view of the contiguous [S, B, D] buffer (free reshape).
    x2 = x.reshape(S, B * D)
    pe = pe.astype(x.dtype)           # cast once; halves pe DMA bytes for bf16 models

    # Per-grid-step VMEM bytes: x tile + out tile (+ bits tile) + pe tile.
    row_bytes = B * D * (2 * x.dtype.itemsize + (4 if apply_dropout else 0)) \
        + D * pe.dtype.itemsize
    tS = _choose_seq_tile(S, row_bytes) if seq_tile is None else int(seq_tile)
    assert S % tS == 0, "seq_tile must divide the sequence length"
    if tS % 8 != 0 and tS != pe.shape[0]:
        # Full-extent fallback (small / odd S): pe block must also be full-extent.
        pe = pe[:S]

    grid = (pl.cdiv(S, tS),)
    in_specs = [
        pl.BlockSpec((tS, B * D), lambda i: (i, 0)),   # x
        pl.BlockSpec((tS, D), lambda i: (i, 0)),       # pe (narrow: D lanes only)
    ]
    args = [x2, pe]

    if apply_dropout:
        if rng_key is None:
            rng_key = jax.random.PRNGKey(0)
        # NOTE: RNG stream necessarily differs from torch's; semantics
        # (Bernoulli keep prob 1-p, scaled by 1/(1-p)) are identical.
        bits = jax.random.bits(rng_key, (S, B * D), dtype=jnp.uint32)
        threshold = min(int(round(float(dropout_p) * 2.0 ** 32)), 2 ** 32 - 1)
        kernel = functools.partial(
            _add_pe_dropout_kernel, batch=B, threshold=threshold,
            scale=1.0 / (1.0 - float(dropout_p)))
        in_specs.append(pl.BlockSpec((tS, B * D), lambda i: (i, 0)))
        args.append(bits)
    else:
        kernel = functools.partial(_add_pe_kernel, batch=B)

    out2 = pl.pallas_call(
        kernel,
        out_shape=jax.ShapeDtypeStruct((S, B * D), x.dtype),
        grid=grid,
        in_specs=in_specs,
        out_specs=pl.BlockSpec((tS, B * D), lambda i: (i, 0)),
        compiler_params=pltpu.CompilerParams(
            dimension_semantics=("parallel",),          # independent steps -> megacore
            vmem_limit_bytes=vmem_limit_bytes),
    )(*args)
    return out2.reshape(S, B, D)


if __name__ == "__main__":
    S, B, D = 8, 2, 32            # [sequence length, batch size, embed dim]
    MAX_LEN = 5000

    key = jax.random.PRNGKey(0)
    kx, kd = jax.random.split(key)
    x = jax.random.normal(kx, (S, B, D), dtype=jnp.float32)
    pe = make_positional_encoding_table(MAX_LEN, D)

    # Eval-mode forward (dropout is identity): exact reference check.
    out = jax.block_until_ready(positional_encoding(x, pe, dropout_p=0.1, training=False))
    ref = x + pe[:S][:, None, :]
    assert out.shape == (S, B, D) and out.dtype == x.dtype
    assert jnp.allclose(out, ref, atol=1e-6), "mismatch vs reference (eval)"

    # Training-mode forward: inverted dropout. Every output element must be either
    # 0 (dropped) or ref/(1-p) (kept & rescaled).
    p = 0.1
    out_train = jax.block_until_ready(
        positional_encoding(x, pe, dropout_p=p, training=True, rng_key=kd))
    assert out_train.shape == (S, B, D) and out_train.dtype == x.dtype
    scaled = ref / (1.0 - p)
    ok = jnp.isclose(out_train, 0.0, atol=1e-6) | jnp.isclose(out_train, scaled,
                                                              atol=1e-5, rtol=1e-5)
    assert bool(jnp.all(ok)), "training output is not a valid inverted-dropout of ref"

    print("KERNEL_OK")
</pallas_src>

<mosaic_0001>
module attributes {stable_mosaic.version = 11 : i64} {
  func.func @_add_pe_kernel(%arg0: i32, %arg1: memref<8x64xf32, #tpu.memory_space<vmem>>, %arg2: memref<8x32xf32, #tpu.memory_space<vmem>>, %arg3: memref<8x64xf32, #tpu.memory_space<vmem>>) attributes {dimension_semantics = [#tpu.dimension_semantics<parallel>], iteration_bounds = array<i64: 1>, scalar_prefetch = 0 : i64, scratch_operands = 0 : i64, tpu.core_type = #tpu.core_type<tc>, window_params = [{transform_indices = @transform_0, window_bounds = array<i64: 8, 64>}, {transform_indices = @transform_1, window_bounds = array<i64: 8, 32>}, {transform_indices = @transform_2, window_bounds = array<i64: 8, 64>}]} {
    %c0 = arith.constant 0 : index
    %c0_0 = arith.constant 0 : index
    %0 = vector.load %arg2[%c0, %c0_0] : memref<8x32xf32, #tpu.memory_space<vmem>>, vector<8x32xf32>
    %1 = tpu.concatenate %0, %0 in 1 : vector<8x32xf32>, vector<8x32xf32> -> vector<8x64xf32>
    %c0_1 = arith.constant 0 : index
    %c0_2 = arith.constant 0 : index
    %2 = vector.load %arg1[%c0_1, %c0_2] : memref<8x64xf32, #tpu.memory_space<vmem>>, vector<8x64xf32>
    %3 = arith.addf %2, %1 : vector<8x64xf32>
    %c0_3 = arith.constant 0 : index
    %c0_4 = arith.constant 0 : index
    %4 = vector.load %arg3[%c0_3, %c0_4] : memref<8x64xf32, #tpu.memory_space<vmem>>, vector<8x64xf32>
    tpu.vector_store %arg3[%c0_3, %c0_4], %3 {strides = array<i32>} : memref<8x64xf32, #tpu.memory_space<vmem>>, vector<8x64xf32>,
    return
  }
  func.func @transform_0(%arg0: i32) -> (i32, i32) {
    %c0_i32 = arith.constant 0 : i32
    %c0_i32_0 = arith.constant 0 : i32
    return %arg0, %c0_i32 : i32, i32
  }
  func.func @transform_1(%arg0: i32) -> (i32, i32) {
    %c0_i32 = arith.constant 0 : i32
    %c0_i32_0 = arith.constant 0 : i32
    return %arg0, %c0_i32 : i32, i32
  }
  func.func @transform_2(%arg0: i32) -> (i32, i32) {
    %c0_i32 = arith.constant 0 : i32
    %c0_i32_0 = arith.constant 0 : i32
    return %arg0, %c0_i32 : i32, i32
  }
}

</mosaic_0001>

<llo_original>
// kernel: tpu_custom_call.1
$region0: #{tpu_custom_call.1}
  #allocation0 [shape = 'u32[]', space=smem, size = 0x4, offset = 0x4, fixed_abs, tag = 'smem constant byte address 0x4 - core index']
  #allocation1 [shape = 'u32[144,128]{1,0:T(1,128)}', space=vmem, size = 0x12000, scoped, tag = 'internal scratch']
  %s0 = inlined_call_operand.vmem [shape: f32[8,64], index: 0, kind: input, shape index: {}]
  %s1 = inlined_call_operand.vmem [shape: f32[5000,32], index: 1, kind: input, shape index: {}]
  %s2 = inlined_call_operand.hbm [shape: f32[8,64], index: 2, kind: output, shape index: {}]
  %s3 = sld [smem:[#allocation0]]
  $region18: #{tpu_custom_call.1} parent=0
    _
  %s5 = ssub.s32 1, %s3
  %s6 = scalar_select 0, %s5, %s3
  $region1: #{tpu_custom_call.1} parent=0
    #allocation2 [shape = 'u8[4096]{0}', space=vmem, size = 0x1000, scoped, tag = 'output window, operand 0, single buffered']
    #allocation3 [shape = 's32[1]{0}', space=sflag, size = 0x4, scoped, tag = 'scoped memory for tpu_custom_call.1']
    %7 = vsyncpa [#allocation3], 0
    // Predicated region
    $region2: #{tpu_custom_call.1} parent=1 // pred_check
      _
    $region3: #{tpu_custom_call.1} parent=1 // pred_check_branch
      %9 = sbr.rel (0) target = $region5
    $region4: #{tpu_custom_call.1} parent=1 // pred_region
      _
    $region5: #{tpu_custom_call.1} parent=1 // pred_fallthru
      _
    // Predicated region
    $region6: #{tpu_custom_call.1} parent=1 // pred_check
      _
    $region7: #{tpu_custom_call.1} parent=1 // pred_check_branch
      %11 = sbr.rel (0) target = $region9
    $region8: #{tpu_custom_call.1} parent=1 // pred_region
      _
    $region9: #{tpu_custom_call.1} parent=1 // pred_fallthru
      _
    %v12 = vld [vmem:[%s1] sm:$0xff]
    %14 = vrot.lane.b32.xlu0 %v12, 32
    %v15 = vpop.permute.xlu0 %14
    %vm17 = vcmask 261120
    %v18 = vsel %vm17, %v12, %v15
    %v19 = vld [vmem:[%s0] sm:$0xff]
    %v20 = vadd.f32 %v19, %v18
    %vm21 = vcmask 523264
    %22 = vst.msk [vmem:[#allocation2] sm:$0xff] %vm21, %v20
    // Predicated region
    $region10: #{tpu_custom_call.1} parent=1 // pred_check
      _
    $region11: #{tpu_custom_call.1} parent=1 // pred_check_branch
      %24 = sbr.rel (0) target = $region13
    $region12: #{tpu_custom_call.1} parent=1 // pred_region
      %s26 = ssub.s32 128, 128
      %27 = vsyncadd [#allocation3], %s26
      %s29 = sshll.u32 [#allocation2], 4
      %s30 = int_to_ptr.vmem [resolvable:$true] %s29
      %32 = dma.vmem_to_hbm [thread:$0]  %s30, 128, %s2, [#allocation3]
    $region13: #{tpu_custom_call.1} parent=1 // pred_fallthru
      _
    // Predicated region
    $region14: #{tpu_custom_call.1} parent=1 // pred_check
      _
    $region15: #{tpu_custom_call.1} parent=1 // pred_check_branch
      %34 = sbr.rel (0) target = $region17
    $region16: #{tpu_custom_call.1} parent=1 // pred_region
      %35 = dma.done [#allocation3], 128
    $region17: #{tpu_custom_call.1} parent=1 // pred_fallthru
      _
    %36 = vsyncpa [#allocation3], 1

</llo_original>
